<compile_context>
chip_gen: v6e
topology: v6e:2x2x1
jax: 0.10.0
libtpu: 0.0.40
codegen_flags: <defaults>
</compile_context>

<pallas_src>
import jax
import jax.numpy as jnp
from jax.experimental import pallas as pl
from jax.experimental.pallas import tpu as pltpu


def _round_up(n, m):
    return (n + m - 1) // m * m


def net2_kernel(x_ref, w1_ref, b1_ref, w2_ref, b2_ref, o_ref):
    # fc1 on the MXU: [TB, In] @ [In, H] with f32 accumulation.
    h = jnp.dot(x_ref[...], w1_ref[...], preferred_element_type=jnp.float32)
    # Bias + ReLU in f32 vregs (keep VPU work out of bf16 on v5e).
    h = jnp.maximum(h + b1_ref[...], 0.0)
    # fc2 on the MXU: cast activations to the weight dtype only at the MXU input.
    out = jnp.dot(h.astype(w2_ref.dtype), w2_ref[...],
                  preferred_element_type=jnp.float32)
    o_ref[...] = (out + b2_ref[...]).astype(o_ref.dtype)


def net2_forward(x, w1, b1, w2, b2, *, weight_dtype=jnp.bfloat16, block_b=128):
    """Fused fc1 -> ReLU -> fc2.

    x: [B, In]; w1: [In, H]; b1: [1, H]; w2: [H, C]; b2: [1, C].
    Weights are the transpose of PyTorch nn.Linear's [out, in] layout so the
    kernel computes y = x @ W + b directly.  Returns [B, C] float32.
    """
    B, In = x.shape
    H = w1.shape[1]
    C = w2.shape[1]

    # ---- shape hygiene: pad to MXU/lane-friendly sizes --------------------
    In_p = _round_up(In, 128)   # clean contraction dim for fc1
    H_p = _round_up(H, 128)     # 500 -> 512: lane-dense h, clean K for fc2
    C_p = _round_up(C, 128)     # 10 -> 128: unmasked lane-dense stores
    TB = block_b if B >= block_b else _round_up(B, 8)
    B_p = _round_up(B, TB)

    # Zero-padding keeps results bit-equivalent: padded inputs/hidden units
    # contribute exactly 0, padded output columns are sliced off below.
    x_p = jnp.zeros((B_p, In_p), weight_dtype).at[:B, :In].set(
        x.astype(weight_dtype))
    w1_p = jnp.zeros((In_p, H_p), weight_dtype).at[:In, :H].set(
        w1.astype(weight_dtype))
    b1_p = jnp.zeros((1, H_p), jnp.float32).at[:, :H].set(
        b1.astype(jnp.float32))
    w2_p = jnp.zeros((H_p, C_p), weight_dtype).at[:H, :C].set(
        w2.astype(weight_dtype))
    b2_p = jnp.zeros((1, C_p), jnp.float32).at[:, :C].set(
        b2.astype(jnp.float32))

    vmem = pltpu.MemorySpace.VMEM
    grid = (B_p // TB,)

    out_p = pl.pallas_call(
        net2_kernel,
        out_shape=jax.ShapeDtypeStruct((B_p, C_p), jnp.float32),
        grid=grid,
        in_specs=[
            # batch-tiled activations
            pl.BlockSpec((TB, In_p), lambda i: (i, 0), memory_space=vmem),
            # weights / biases: constant block index -> DMA'd once, resident
            pl.BlockSpec((In_p, H_p), lambda i: (0, 0), memory_space=vmem),
            pl.BlockSpec((1, H_p), lambda i: (0, 0), memory_space=vmem),
            pl.BlockSpec((H_p, C_p), lambda i: (0, 0), memory_space=vmem),
            pl.BlockSpec((1, C_p), lambda i: (0, 0), memory_space=vmem),
        ],
        out_specs=pl.BlockSpec((TB, C_p), lambda i: (i, 0), memory_space=vmem),
        compiler_params=pltpu.CompilerParams(
            # batch tiles are independent -> megacore sharding on v7x
            dimension_semantics=("parallel",)),
    )(x_p, w1_p, b1_p, w2_p, b2_p)

    return out_p[:B, :C]


def net2_reference(x, w1, b1, w2, b2, dtype=jnp.float32):
    """Pure-JAX reference with the same precision choices as the kernel."""
    xd = x.astype(dtype)
    w1d = w1.astype(dtype)
    w2d = w2.astype(dtype)
    h = jnp.dot(xd, w1d, preferred_element_type=jnp.float32) + b1.astype(jnp.float32)
    h = jnp.maximum(h, 0.0)
    out = jnp.dot(h.astype(dtype), w2d, preferred_element_type=jnp.float32)
    return out + b2.astype(jnp.float32)


if __name__ == "__main__":
    # Small shapes consistent with Net2(input_size, num_classes),
    # hidden_layer_size = 500 hard-coded in the module.
    batch = 8
    input_size = 256
    hidden = 500
    num_classes = 10

    key = jax.random.PRNGKey(0)
    kx, kw1, kb1, kw2, kb2, kx2 = jax.random.split(key, 6)

    x = jax.random.normal(kx, (batch, input_size), dtype=jnp.float32)

    # Deterministic init mimicking nn.Linear's uniform(-1/sqrt(fan_in), ...)
    lim1 = 1.0 / jnp.sqrt(jnp.float32(input_size))
    w1 = jax.random.uniform(kw1, (input_size, hidden), jnp.float32,
                            minval=-lim1, maxval=lim1)
    b1 = jax.random.uniform(kb1, (1, hidden), jnp.float32,
                            minval=-lim1, maxval=lim1)

    lim2 = 1.0 / jnp.sqrt(jnp.float32(hidden))
    w2 = jax.random.uniform(kw2, (hidden, num_classes), jnp.float32,
                            minval=-lim2, maxval=lim2)
    b2 = jax.random.uniform(kb2, (1, num_classes), jnp.float32,
                            minval=-lim2, maxval=lim2)

    # Small-batch path (single grid step).
    out = jax.block_until_ready(net2_forward(x, w1, b1, w2, b2))
    assert out.shape == (batch, num_classes)
    ref_bf16 = net2_reference(x, w1, b1, w2, b2, dtype=jnp.bfloat16)
    ref_f32 = net2_reference(x, w1, b1, w2, b2, dtype=jnp.float32)
    assert jnp.allclose(out, ref_bf16, atol=1e-3, rtol=1e-3)
    assert jnp.allclose(out, ref_f32, atol=5e-2, rtol=5e-2)

    # Larger batch exercises the batch-tiled grid (2 tiles of 128 rows).
    x_large = jax.random.normal(kx2, (256, input_size), dtype=jnp.float32)
    out_large = jax.block_until_ready(net2_forward(x_large, w1, b1, w2, b2))
    assert out_large.shape == (256, num_classes)
    ref_large = net2_reference(x_large, w1, b1, w2, b2, dtype=jnp.bfloat16)
    assert jnp.allclose(out_large, ref_large, atol=1e-3, rtol=1e-3)

    print("KERNEL_OK")
</pallas_src>

<mosaic_0001>
module attributes {stable_mosaic.version = 11 : i64} {
  func.func @net2_kernel(%arg0: i32, %arg1: memref<8x256xbf16, #tpu.memory_space<vmem>>, %arg2: memref<256x512xbf16, #tpu.memory_space<vmem>>, %arg3: memref<1x512xf32, #tpu.memory_space<vmem>>, %arg4: memref<512x128xbf16, #tpu.memory_space<vmem>>, %arg5: memref<1x128xf32, #tpu.memory_space<vmem>>, %arg6: memref<8x128xf32, #tpu.memory_space<vmem>>) attributes {dimension_semantics = [#tpu.dimension_semantics<parallel>], iteration_bounds = array<i64: 1>, scalar_prefetch = 0 : i64, scratch_operands = 0 : i64, tpu.core_type = #tpu.core_type<tc>, window_params = [{transform_indices = @transform_0, window_bounds = array<i64: 8, 256>}, {pipeline_mode = #tpu.pipeline_mode<synchronous>, transform_indices = @transform_1, window_bounds = array<i64: 256, 512>}, {pipeline_mode = #tpu.pipeline_mode<synchronous>, transform_indices = @transform_2, window_bounds = array<i64: 1, 512>}, {pipeline_mode = #tpu.pipeline_mode<synchronous>, transform_indices = @transform_3, window_bounds = array<i64: 512, 128>}, {pipeline_mode = #tpu.pipeline_mode<synchronous>, transform_indices = @transform_4, window_bounds = array<i64: 1, 128>}, {transform_indices = @transform_5, window_bounds = array<i64: 8, 128>}]} {
    %c0 = arith.constant 0 : index
    %c0_0 = arith.constant 0 : index
    %0 = vector.load %arg1[%c0, %c0_0] : memref<8x256xbf16, #tpu.memory_space<vmem>>, vector<8x256xbf16>
    %c0_1 = arith.constant 0 : index
    %c0_2 = arith.constant 0 : index
    %1 = vector.load %arg2[%c0_1, %c0_2] : memref<256x512xbf16, #tpu.memory_space<vmem>>, vector<256x512xbf16>
    %cst = arith.constant dense<0.000000e+00> : vector<8x512xf32>
    %2 = tpu.matmul %0, %1, %cst {dimension_numbers = #tpu.dot_dimension_numbers<[1], [0], [0], [1], [0, 0, 1, 1], [], []>} : vector<8x256xbf16>, vector<256x512xbf16>, vector<8x512xf32> -> vector<8x512xf32>
    %c0_3 = arith.constant 0 : index
    %c0_4 = arith.constant 0 : index
    %3 = vector.load %arg3[%c0_3, %c0_4] : memref<1x512xf32, #tpu.memory_space<vmem>>, vector<1x512xf32>
    %4 = vector.broadcast %3 : vector<1x512xf32> to vector<8x512xf32>
    %5 = arith.addf %2, %4 : vector<8x512xf32>
    %cst_5 = arith.constant 0.000000e+00 : f32
    %6 = vector.broadcast %cst_5 : f32 to vector<8x512xf32>
    %7 = arith.maximumf %5, %6 : vector<8x512xf32>
    %8 = arith.truncf %7 : vector<8x512xf32> to vector<8x512xbf16>
    %c0_6 = arith.constant 0 : index
    %c0_7 = arith.constant 0 : index
    %9 = vector.load %arg4[%c0_6, %c0_7] : memref<512x128xbf16, #tpu.memory_space<vmem>>, vector<512x128xbf16>
    %cst_8 = arith.constant dense<0.000000e+00> : vector<8x128xf32>
    %10 = tpu.matmul %8, %9, %cst_8 {dimension_numbers = #tpu.dot_dimension_numbers<[1], [0], [0], [1], [0, 0, 1, 1], [], []>} : vector<8x512xbf16>, vector<512x128xbf16>, vector<8x128xf32> -> vector<8x128xf32>
    %c0_9 = arith.constant 0 : index
    %c0_10 = arith.constant 0 : index
    %11 = vector.load %arg5[%c0_9, %c0_10] : memref<1x128xf32, #tpu.memory_space<vmem>>, vector<1x128xf32>
    %12 = vector.broadcast %11 : vector<1x128xf32> to vector<8x128xf32>
    %13 = arith.addf %10, %12 : vector<8x128xf32>
    %c0_11 = arith.constant 0 : index
    %c0_12 = arith.constant 0 : index
    %14 = vector.load %arg6[%c0_11, %c0_12] : memref<8x128xf32, #tpu.memory_space<vmem>>, vector<8x128xf32>
    tpu.vector_store %arg6[%c0_11, %c0_12], %13 {strides = array<i32>} : memref<8x128xf32, #tpu.memory_space<vmem>>, vector<8x128xf32>,
    return
  }
  func.func @transform_0(%arg0: i32) -> (i32, i32) {
    %c0_i32 = arith.constant 0 : i32
    %c0_i32_0 = arith.constant 0 : i32
    return %arg0, %c0_i32 : i32, i32
  }
  func.func @transform_1(%arg0: i32) -> (i32, i32) {
    %c0_i32 = arith.constant 0 : i32
    %c0_i32_0 = arith.constant 0 : i32
    %c0_i32_1 = arith.constant 0 : i32
    return %c0_i32, %c0_i32_0 : i32, i32
  }
  func.func @transform_2(%arg0: i32) -> (i32, i32) {
    %c0_i32 = arith.constant 0 : i32
    %c0_i32_0 = arith.constant 0 : i32
    %c0_i32_1 = arith.constant 0 : i32
    return %c0_i32, %c0_i32_0 : i32, i32
  }
  func.func @transform_3(%arg0: i32) -> (i32, i32) {
    %c0_i32 = arith.constant 0 : i32
    %c0_i32_0 = arith.constant 0 : i32
    %c0_i32_1 = arith.constant 0 : i32
    return %c0_i32, %c0_i32_0 : i32, i32
  }
  func.func @transform_4(%arg0: i32) -> (i32, i32) {
    %c0_i32 = arith.constant 0 : i32
    %c0_i32_0 = arith.constant 0 : i32
    %c0_i32_1 = arith.constant 0 : i32
    return %c0_i32, %c0_i32_0 : i32, i32
  }
  func.func @transform_5(%arg0: i32) -> (i32, i32) {
    %c0_i32 = arith.constant 0 : i32
    %c0_i32_0 = arith.constant 0 : i32
    return %arg0, %c0_i32 : i32, i32
  }
}

</mosaic_0001>

<llo_original>
// kernel: tpu_custom_call.1
$region0: #{tpu_custom_call.1}
  #allocation0 [shape = 'u32[]', space=smem, size = 0x4, offset = 0x4, fixed_abs, tag = 'smem constant byte address 0x4 - core index']
  #allocation1 [shape = 'u32[144,128]{1,0:T(1,128)}', space=vmem, size = 0x12000, scoped, tag = 'internal scratch']
  %s0 = inlined_call_operand.hbm [shape: bf16[8,256], index: 0, kind: input, shape index: {}]
  %s1 = inlined_call_operand.hbm [shape: bf16[256,512], index: 1, kind: input, shape index: {}]
  %s2 = inlined_call_operand.hbm [shape: f32[1,512], index: 2, kind: input, shape index: {}]
  %s3 = inlined_call_operand.hbm [shape: bf16[512,128], index: 3, kind: input, shape index: {}]
  %s4 = inlined_call_operand.vmem [shape: f32[1,128], index: 4, kind: input, shape index: {}]
  %s5 = inlined_call_operand.hbm [shape: f32[8,128], index: 5, kind: output, shape index: {}]
  %s6 = sld [smem:[#allocation0]]
  $region46: #{tpu_custom_call.1} parent=0
    _
  %s8 = ssub.s32 1, %s6
  %s9 = scalar_select 0, %s8, %s6
  $region1: #{tpu_custom_call.1} parent=0
    #allocation2 [shape = 'u8[4096]{0}', space=vmem, size = 0x1000, scoped, tag = 'input window, operand 0, single buffered']
    #allocation3 [shape = 's32[1]{0}', space=sflag, size = 0x4, scoped, tag = 'scoped memory for tpu_custom_call.1']
    #allocation4 [shape = 's32[1]{0}', space=sflag, size = 0x4, scoped, tag = 'scoped memory for tpu_custom_call.1']
    #allocation5 [shape = 'u8[262144]{0}', space=vmem, size = 0x40000, scoped, tag = 'input window, operand 1, single buffered']
    #allocation6 [shape = 's32[1]{0}', space=sflag, size = 0x4, scoped, tag = 'scoped memory for tpu_custom_call.1']
    #allocation7 [shape = 'u8[2048]{0}', space=vmem, size = 0x800, scoped, tag = 'input window, operand 2, single buffered']
    #allocation8 [shape = 'u8[131072]{0}', space=vmem, size = 0x20000, scoped, tag = 'input window, operand 3, single buffered']
    #allocation9 [shape = 's32[1]{0}', space=sflag, size = 0x4, scoped, tag = 'scoped memory for tpu_custom_call.1']
    #allocation10 [shape = 'u8[4096]{0}', space=vmem, size = 0x1000, scoped, tag = 'output window, operand 0, single buffered']
    %10 = vsyncpa [#allocation3], 0
    %11 = vsyncpa [#allocation6], 0
    %12 = vsyncpa [#allocation9], 0
    %13 = vsyncpa [#allocation4], 0
    // Predicated region
    $region2: #{tpu_custom_call.1} parent=1 // pred_check
      _
    $region3: #{tpu_custom_call.1} parent=1 // pred_check_branch
      %15 = sbr.rel (0) target = $region5
    $region4: #{tpu_custom_call.1} parent=1 // pred_region
      %s17 = ssub.s32 128, 128
      %18 = vsyncadd [#allocation3], %s17
      %s20 = sshll.u32 [#allocation2], 4
      %s21 = int_to_ptr.vmem [resolvable:$true] %s20
      %23 = dma.hbm_to_vmem [thread:$0]  %s0, 128, %s21, [#allocation3]
    $region5: #{tpu_custom_call.1} parent=1 // pred_fallthru
      _
    // Predicated region
    $region6: #{tpu_custom_call.1} parent=1 // pred_check
      _
    $region7: #{tpu_custom_call.1} parent=1 // pred_check_branch
      %25 = sbr.rel (0) target = $region9
    $region8: #{tpu_custom_call.1} parent=1 // pred_region
      %s27 = ssub.s32 8192, 8192
      %28 = vsyncadd [#allocation6], %s27
      %s29 = sshll.u32 [#allocation5], 4
      %s30 = int_to_ptr.vmem [resolvable:$true] %s29
      %35 = dma.hbm_to_vmem [thread:$0]  %s1, 8192, %s30, [#allocation6], 256, 256, 16
    $region9: #{tpu_custom_call.1} parent=1 // pred_fallthru
      _
    // Predicated region
    $region10: #{tpu_custom_call.1} parent=1 // pred_check
      _
    $region11: #{tpu_custom_call.1} parent=1 // pred_check_branch
      %37 = sbr.rel (0) target = $region13
    $region12: #{tpu_custom_call.1} parent=1 // pred_region
      %s39 = ssub.s32 64, 64
      %40 = vsyncadd [#allocation6], %s39
      %s42 = sshll.u32 [#allocation7], 4
      %s43 = int_to_ptr.vmem [resolvable:$true] %s42
      %45 = dma.hbm_to_vmem [thread:$0]  %s2, 64, %s43, [#allocation6]
    $region13: #{tpu_custom_call.1} parent=1 // pred_fallthru
      _
    // Predicated region
    $region14: #{tpu_custom_call.1} parent=1 // pred_check
      _
    $region15: #{tpu_custom_call.1} parent=1 // pred_check_branch
      %47 = sbr.rel (0) target = $region17
    $region16: #{tpu_custom_call.1} parent=1 // pred_region
      %s49 = ssub.s32 4096, 4096
      %50 = vsyncadd [#allocation9], %s49
      %s51 = sshll.u32 [#allocation8], 4
      %s52 = int_to_ptr.vmem [resolvable:$true] %s51
      %57 = dma.hbm_to_vmem [thread:$0]  %s3, 4096, %s52, [#allocation9], 64, 64, 4
    $region17: #{tpu_custom_call.1} parent=1 // pred_fallthru
      _
    // Predicated region
    $region18: #{tpu_custom_call.1} parent=1 // pred_check
      _
    $region19: #{tpu_custom_call.1} parent=1 // pred_check_branch
      %59 = sbr.rel (0) target = $region21
    $region20: #{tpu_custom_call.1} parent=1 // pred_region
      _
    $region21: #{tpu_custom_call.1} parent=1 // pred_fallthru
      _
    // Predicated region
    $region22: #{tpu_custom_call.1} parent=1 // pred_check
      _
    $region23: #{tpu_custom_call.1} parent=1 // pred_check_branch
      %61 = sbr.rel (0) target = $region25
    $region24: #{tpu_custom_call.1} parent=1 // pred_region
      %62 = dma.done [#allocation3], 128
    $region25: #{tpu_custom_call.1} parent=1 // pred_fallthru
      _
    // Predicated region
    $region26: #{tpu_custom_call.1} parent=1 // pred_check
      _
    $region27: #{tpu_custom_call.1} parent=1 // pred_check_branch
      %64 = sbr.rel (0) target = $region29
    $region28: #{tpu_custom_call.1} parent=1 // pred_region
      %65 = dma.done [#allocation6], 8192
    $region29: #{tpu_custom_call.1} parent=1 // pred_fallthru
      _
    // Predicated region
    $region30: #{tpu_custom_call.1} parent=1 // pred_check
      _
    $region31: #{tpu_custom_call.1} parent=1 // pred_check_branch
      %67 = sbr.rel (0) target = $region33
    $region32: #{tpu_custom_call.1} parent=1 // pred_region
      %68 = dma.done [#allocation6], 64
    $region33: #{tpu_custom_call.1} parent=1 // pred_fallthru
      _
    // Predicated region
    $region34: #{tpu_custom_call.1} parent=1 // pred_check
      _
    $region35: #{tpu_custom_call.1} parent=1 // pred_check_branch
      %70 = sbr.rel (0) target = $region37
    $region36: #{tpu_custom_call.1} parent=1 // pred_region
      %71 = dma.done [#allocation9], 4096
    $region37: #{tpu_custom_call.1} parent=1 // pred_fallthru
      _
    %v73 = vld [vmem:[#allocation2] sm:$0xff]
    %v74 = vld [vmem:[#allocation5] sm:$0xff]
    %v75 = vld [vmem:[#allocation5 + $0x8] sm:$0xff]
    %v76 = vld [vmem:[#allocation5 + $0x10] sm:$0xff]
    %v77 = vld [vmem:[#allocation5 + $0x18] sm:$0xff]
    %v78 = vld [vmem:[#allocation5 + $0x20] sm:$0xff]
    %v79 = vld [vmem:[#allocation5 + $0x28] sm:$0xff]
    %v80 = vld [vmem:[#allocation5 + $0x30] sm:$0xff]
    %v81 = vld [vmem:[#allocation5 + $0x38] sm:$0xff]
    %v82 = vld [vmem:[#allocation5 + $0x40] sm:$0xff]
    %v83 = vld [vmem:[#allocation5 + $0x48] sm:$0xff]
    %v84 = vld [vmem:[#allocation5 + $0x50] sm:$0xff]
    %v85 = vld [vmem:[#allocation5 + $0x58] sm:$0xff]
    %v86 = vld [vmem:[#allocation5 + $0x60] sm:$0xff]
    %v87 = vld [vmem:[#allocation5 + $0x68] sm:$0xff]
    %v88 = vld [vmem:[#allocation5 + $0x70] sm:$0xff]
    %v89 = vld [vmem:[#allocation5 + $0x78] sm:$0xff]
    %v90 = vld [vmem:[#allocation5 + $0x80] sm:$0xff]
    %v91 = vld [vmem:[#allocation5 + $0x88] sm:$0xff]
    %v92 = vld [vmem:[#allocation5 + $0x90] sm:$0xff]
    %v93 = vld [vmem:[#allocation5 + $0x98] sm:$0xff]
    %v94 = vld [vmem:[#allocation5 + $0xa0] sm:$0xff]
    %v95 = vld [vmem:[#allocation5 + $0xa8] sm:$0xff]
    %v96 = vld [vmem:[#allocation5 + $0xb0] sm:$0xff]
    %v97 = vld [vmem:[#allocation5 + $0xb8] sm:$0xff]
    %v98 = vld [vmem:[#allocation5 + $0xc0] sm:$0xff]
    %v99 = vld [vmem:[#allocation5 + $0xc8] sm:$0xff]
    %v100 = vld [vmem:[#allocation5 + $0xd0] sm:$0xff]
    %v101 = vld [vmem:[#allocation5 + $0xd8] sm:$0xff]
    %v102 = vld [vmem:[#allocation5 + $0xe0] sm:$0xff]
    %v103 = vld [vmem:[#allocation5 + $0xe8] sm:$0xff]
    %v104 = vld [vmem:[#allocation5 + $0xf0] sm:$0xff]
    %v105 = vld [vmem:[#allocation5 + $0xf8] sm:$0xff]
    %v106 = vld [vmem:[#allocation5 + $0x100] sm:$0xff]
    %v107 = vld [vmem:[#allocation5 + $0x108] sm:$0xff]
    %v108 = vld [vmem:[#allocation5 + $0x110] sm:$0xff]
    %v109 = vld [vmem:[#allocation5 + $0x118] sm:$0xff]
    %v110 = vld [vmem:[#allocation5 + $0x120] sm:$0xff]
    %v111 = vld [vmem:[#allocation5 + $0x128] sm:$0xff]
    %v112 = vld [vmem:[#allocation5 + $0x130] sm:$0xff]
    %v113 = vld [vmem:[#allocation5 + $0x138] sm:$0xff]
    %v114 = vld [vmem:[#allocation5 + $0x140] sm:$0xff]
    %v115 = vld [vmem:[#allocation5 + $0x148] sm:$0xff]
    %v116 = vld [vmem:[#allocation5 + $0x150] sm:$0xff]
    %v117 = vld [vmem:[#allocation5 + $0x158] sm:$0xff]
    %v118 = vld [vmem:[#allocation5 + $0x160] sm:$0xff]
    %v119 = vld [vmem:[#allocation5 + $0x168] sm:$0xff]
    %v120 = vld [vmem:[#allocation5 + $0x170] sm:$0xff]
    %v121 = vld [vmem:[#allocation5 + $0x178] sm:$0xff]
    %v122 = vld [vmem:[#allocation5 + $0x180] sm:$0xff]
    %v123 = vld [vmem:[#allocation5 + $0x188] sm:$0xff]
    %v124 = vld [vmem:[#allocation5 + $0x190] sm:$0xff]
    %v125 = vld [vmem:[#allocation5 + $0x198] sm:$0xff]
    %v126 = vld [vmem:[#allocation5 + $0x1a0] sm:$0xff]
    %v127 = vld [vmem:[#allocation5 + $0x1a8] sm:$0xff]
    %v128 = vld [vmem:[#allocation5 + $0x1b0] sm:$0xff]
    %v129 = vld [vmem:[#allocation5 + $0x1b8] sm:$0xff]
    %v130 = vld [vmem:[#allocation5 + $0x1c0] sm:$0xff]
    %v131 = vld [vmem:[#allocation5 + $0x1c8] sm:$0xff]
    %v132 = vld [vmem:[#allocation5 + $0x1d0] sm:$0xff]
    %v133 = vld [vmem:[#allocation5 + $0x1d8] sm:$0xff]
    %v134 = vld [vmem:[#allocation5 + $0x1e0] sm:$0xff]
    %v135 = vld [vmem:[#allocation5 + $0x1e8] sm:$0xff]
    %v136 = vld [vmem:[#allocation5 + $0x1f0] sm:$0xff]
    %v137 = vld [vmem:[#allocation5 + $0x1f8] sm:$0xff]
    %v138 = vld [vmem:[#allocation7] sm:$0xf]
    %v140 = vlaneseq
    %v141 = vshrl.u32 %v140, 7
    %v142 = vsub.s32 0, %v141
    %v143 = vrot.slane %v138, %v142
    %v144 = vlaneseq
    %v145 = vshrl.u32 %v144, 7
    %v146 = vsub.s32 1, %v145
    %v147 = vrot.slane %v138, %v146
    %v148 = vlaneseq
    %v149 = vshrl.u32 %v148, 7
    %v150 = vsub.s32 2, %v149
    %v151 = vrot.slane %v138, %v150
    %v152 = vlaneseq
    %v153 = vshrl.u32 %v152, 7
    %v154 = vsub.s32 3, %v153
    %v155 = vrot.slane %v138, %v154
    %v161 = vunpack.c.l.b16 %v73
    %v162 = vunpack.c.h.b16 %v73
    %v163 = vpack.c.b16 %v161, %v161
    %v164 = vpack.c.b16 %v162, %v162
    %v231 = vunpack.c.l.b16 %v74
    %v232 = vunpack.c.h.b16 %v74
    %v233 = vunpack.c.l.b16 %v75
    %v234 = vunpack.c.h.b16 %v75
    %v235 = vunpack.c.l.b16 %v76
    %v236 = vunpack.c.h.b16 %v76
    %v237 = vunpack.c.l.b16 %v77
    %v238 = vunpack.c.h.b16 %v77
    %v239 = vunpack.c.l.b16 %v78
    %v240 = vunpack.c.h.b16 %v78
    %v241 = vunpack.c.l.b16 %v79
    %v242 = vunpack.c.h.b16 %v79
    %v243 = vunpack.c.l.b16 %v80
    %v244 = vunpack.c.h.b16 %v80
    %v245 = vunpack.c.l.b16 %v81
    %v246 = vunpack.c.h.b16 %v81
    %v247 = vunpack.c.l.b16 %v82
    %v248 = vunpack.c.h.b16 %v82
    %v249 = vunpack.c.l.b16 %v83
    %v250 = vunpack.c.h.b16 %v83
    %v251 = vunpack.c.l.b16 %v84
    %v252 = vunpack.c.h.b16 %v84
    %v253 = vunpack.c.l.b16 %v85
    %v254 = vunpack.c.h.b16 %v85
    %v255 = vunpack.c.l.b16 %v86
    %v256 = vunpack.c.h.b16 %v86
    %v257 = vunpack.c.l.b16 %v87
    %v258 = vunpack.c.h.b16 %v87
    %v259 = vunpack.c.l.b16 %v88
    %v260 = vunpack.c.h.b16 %v88
    %v261 = vunpack.c.l.b16 %v89
    %v262 = vunpack.c.h.b16 %v89
    %v263 = vunpack.c.l.b16 %v90
    %v264 = vunpack.c.h.b16 %v90
    %v265 = vunpack.c.l.b16 %v91
    %v266 = vunpack.c.h.b16 %v91
    %v267 = vunpack.c.l.b16 %v92
    %v268 = vunpack.c.h.b16 %v92
    %v269 = vunpack.c.l.b16 %v93
    %v270 = vunpack.c.h.b16 %v93
    %v271 = vunpack.c.l.b16 %v94
    %v272 = vunpack.c.h.b16 %v94
    %v273 = vunpack.c.l.b16 %v95
    %v274 = vunpack.c.h.b16 %v95
    %v275 = vunpack.c.l.b16 %v96
    %v276 = vunpack.c.h.b16 %v96
    %v277 = vunpack.c.l.b16 %v97
    %v278 = vunpack.c.h.b16 %v97
    %v279 = vunpack.c.l.b16 %v98
    %v280 = vunpack.c.h.b16 %v98
    %v281 = vunpack.c.l.b16 %v99
    %v282 = vunpack.c.h.b16 %v99
    %v283 = vunpack.c.l.b16 %v100
    %v284 = vunpack.c.h.b16 %v100
    %v285 = vunpack.c.l.b16 %v101
    %v286 = vunpack.c.h.b16 %v101
    %v287 = vunpack.c.l.b16 %v102
    %v288 = vunpack.c.h.b16 %v102
    %v289 = vunpack.c.l.b16 %v103
    %v290 = vunpack.c.h.b16 %v103
    %v291 = vunpack.c.l.b16 %v104
    %v292 = vunpack.c.h.b16 %v104
    %v293 = vunpack.c.l.b16 %v105
    %v294 = vunpack.c.h.b16 %v105
    %v295 = vunpack.c.l.b16 %v106
    %v296 = vunpack.c.h.b16 %v106
    %v297 = vunpack.c.l.b16 %v107
    %v298 = vunpack.c.h.b16 %v107
    %v299 = vunpack.c.l.b16 %v108
    %v300 = vunpack.c.h.b16 %v108
    %v301 = vunpack.c.l.b16 %v109
    %v302 = vunpack.c.h.b16 %v109
    %v303 = vunpack.c.l.b16 %v110
    %v304 = vunpack.c.h.b16 %v110
    %v305 = vunpack.c.l.b16 %v111
    %v306 = vunpack.c.h.b16 %v111
    %v307 = vunpack.c.l.b16 %v112
    %v308 = vunpack.c.h.b16 %v112
    %v309 = vunpack.c.l.b16 %v113
    %v310 = vunpack.c.h.b16 %v113
    %v311 = vunpack.c.l.b16 %v114
    %v312 = vunpack.c.h.b16 %v114
    %v313 = vunpack.c.l.b16 %v115
    %v314 = vunpack.c.h.b16 %v115
    %v315 = vunpack.c.l.b16 %v116
    %v316 = vunpack.c.h.b16 %v116
    %v317 = vunpack.c.l.b16 %v117
    %v318 = vunpack.c.h.b16 %v117
    %v319 = vunpack.c.l.b16 %v118
    %v320 = vunpack.c.h.b16 %v118
    %v321 = vunpack.c.l.b16 %v119
    %v322 = vunpack.c.h.b16 %v119
    %v323 = vunpack.c.l.b16 %v120
    %v324 = vunpack.c.h.b16 %v120
    %v325 = vunpack.c.l.b16 %v121
    %v326 = vunpack.c.h.b16 %v121
    %v327 = vunpack.c.l.b16 %v122
    %v328 = vunpack.c.h.b16 %v122
    %v329 = vunpack.c.l.b16 %v123
    %v330 = vunpack.c.h.b16 %v123
    %v331 = vunpack.c.l.b16 %v124
    %v332 = vunpack.c.h.b16 %v124
    %v333 = vunpack.c.l.b16 %v125
    %v334 = vunpack.c.h.b16 %v125
    %v335 = vunpack.c.l.b16 %v126
    %v336 = vunpack.c.h.b16 %v126
    %v337 = vunpack.c.l.b16 %v127
    %v338 = vunpack.c.h.b16 %v127
    %v339 = vunpack.c.l.b16 %v128
    %v340 = vunpack.c.h.b16 %v128
    %v341 = vunpack.c.l.b16 %v129
    %v342 = vunpack.c.h.b16 %v129
    %v343 = vunpack.c.l.b16 %v130
    %v344 = vunpack.c.h.b16 %v130
    %v345 = vunpack.c.l.b16 %v131
    %v346 = vunpack.c.h.b16 %v131
    %v347 = vunpack.c.l.b16 %v132
    %v348 = vunpack.c.h.b16 %v132
    %v349 = vunpack.c.l.b16 %v133
    %v350 = vunpack.c.h.b16 %v133
    %v351 = vunpack.c.l.b16 %v134
    %v352 = vunpack.c.h.b16 %v134
    %v353 = vunpack.c.l.b16 %v135
    %v354 = vunpack.c.h.b16 %v135
    %v355 = vunpack.c.l.b16 %v136
    %v356 = vunpack.c.h.b16 %v136
    %v357 = vunpack.c.l.b16 %v137
    %v358 = vunpack.c.h.b16 %v137
    %v359 = vpack.c.b16 %v235, %v231
    %v360 = vpack.c.b16 %v236, %v232
    %v361 = vpack.c.b16 %v237, %v233
    %v362 = vpack.c.b16 %v238, %v234
    %v363 = vpack.c.b16 %v243, %v239
    %v364 = vpack.c.b16 %v244, %v240
    %v365 = vpack.c.b16 %v245, %v241
    %v366 = vpack.c.b16 %v246, %v242
    %v367 = vpack.c.b16 %v251, %v247
    %v368 = vpack.c.b16 %v252, %v248
    %v369 = vpack.c.b16 %v253, %v249
    %v370 = vpack.c.b16 %v254, %v250
    %v371 = vpack.c.b16 %v259, %v255
    %v372 = vpack.c.b16 %v260, %v256
    %v373 = vpack.c.b16 %v261, %v257
    %v374 = vpack.c.b16 %v262, %v258
    %v375 = vpack.c.b16 %v267, %v263
    %v376 = vpack.c.b16 %v268, %v264
    %v377 = vpack.c.b16 %v269, %v265
    %v378 = vpack.c.b16 %v270, %v266
    %v379 = vpack.c.b16 %v275, %v271
    %v380 = vpack.c.b16 %v276, %v272
    %v381 = vpack.c.b16 %v277, %v273
    %v382 = vpack.c.b16 %v278, %v274
    %v383 = vpack.c.b16 %v283, %v279
    %v384 = vpack.c.b16 %v284, %v280
    %v385 = vpack.c.b16 %v285, %v281
    %v386 = vpack.c.b16 %v286, %v282
    %v387 = vpack.c.b16 %v291, %v287
    %v388 = vpack.c.b16 %v292, %v288
    %v389 = vpack.c.b16 %v293, %v289
    %v390 = vpack.c.b16 %v294, %v290
    %v391 = vpack.c.b16 %v299, %v295
    %v392 = vpack.c.b16 %v300, %v296
    %v393 = vpack.c.b16 %v301, %v297
    %v394 = vpack.c.b16 %v302, %v298
    %v395 = vpack.c.b16 %v307, %v303
    %v396 = vpack.c.b16 %v308, %v304
    %v397 = vpack.c.b16 %v309, %v305
    %v398 = vpack.c.b16 %v310, %v306
    %v399 = vpack.c.b16 %v315, %v311
    %v400 = vpack.c.b16 %v316, %v312
    %v401 = vpack.c.b16 %v317, %v313
    %v402 = vpack.c.b16 %v318, %v314
    %v403 = vpack.c.b16 %v323, %v319
    %v404 = vpack.c.b16 %v324, %v320
    %v405 = vpack.c.b16 %v325, %v321
    %v406 = vpack.c.b16 %v326, %v322
    %v407 = vpack.c.b16 %v331, %v327
    %v408 = vpack.c.b16 %v332, %v328
    %v409 = vpack.c.b16 %v333, %v329
    %v410 = vpack.c.b16 %v334, %v330
    %v411 = vpack.c.b16 %v339, %v335
    %v412 = vpack.c.b16 %v340, %v336
    %v413 = vpack.c.b16 %v341, %v337
    %v414 = vpack.c.b16 %v342, %v338
    %v415 = vpack.c.b16 %v347, %v343
    %v416 = vpack.c.b16 %v348, %v344
    %v417 = vpack.c.b16 %v349, %v345
    %v418 = vpack.c.b16 %v350, %v346
    %v419 = vpack.c.b16 %v355, %v351
    %v420 = vpack.c.b16 %v356, %v352
    %v421 = vpack.c.b16 %v357, %v353
    %v422 = vpack.c.b16 %v358, %v354
    %487 = vmatprep.subr.bf16.mxu0 %v388
    %488 = vmatpush1.bf16.msra.mxu0 %v387
    %489 = vmatprep.subr.bf16.mxu0 %v384
    %490 = vmatpush1.bf16.msra.mxu0 %v383
    %491 = vmatprep.subr.bf16.mxu0 %v380
    %492 = vmatpush1.bf16.msra.mxu0 %v379
    %493 = vmatprep.subr.bf16.mxu0 %v376
    %494 = vmatpush1.bf16.msra.mxu0 %v375
    %495 = vmatprep.subr.bf16.mxu0 %v372
    %496 = vmatpush1.bf16.msra.mxu0 %v371
    %497 = vmatprep.subr.bf16.mxu0 %v368
    %498 = vmatpush1.bf16.msra.mxu0 %v367
    %499 = vmatprep.subr.bf16.mxu0 %v364
    %500 = vmatpush1.bf16.msra.mxu0 %v363
    %501 = vmatprep.subr.bf16.mxu0 %v360
    %502 = vmatpush1.bf16.msra.mxu0 %v359
    %503 = vmatprep.subr.bf16.mxu0 %v420
    %504 = vmatpush2.bf16.msra.mxu0 %v419
    %505 = vmatprep.subr.bf16.mxu0 %v416
    %506 = vmatpush2.bf16.msra.mxu0 %v415
    %507 = vmatprep.subr.bf16.mxu0 %v412
    %508 = vmatpush2.bf16.msra.mxu0 %v411
    %509 = vmatprep.subr.bf16.mxu0 %v408
    %510 = vmatpush2.bf16.msra.mxu0 %v407
    %511 = vmatprep.subr.bf16.mxu0 %v404
    %512 = vmatpush2.bf16.msra.mxu0 %v403
    %513 = vmatprep.subr.bf16.mxu0 %v400
    %514 = vmatpush2.bf16.msra.mxu0 %v399
    %515 = vmatprep.subr.bf16.mxu0 %v396
    %516 = vmatpush2.bf16.msra.mxu0 %v395
    %517 = vmatprep.subr.bf16.mxu0 %v392
    %518 = vmatpush2.bf16.msra.mxu0 %v391
    %519 = vmatprep.mubr.bf16.mxu0 %v164
    %520 = vmatmul.mubr.bf16.gmra.mxu0 %v163
    %v521 = vpop.f32.mrf.mxu0
    %v522 = vadd.f32 %v143, %v521
    %v523 = vpop.f32.mrf.mxu0
    %v524 = vadd.f32 %v147, %v523
    %v525 = vpop.f32.mrf.mxu0
    %v526 = vpop.f32.mrf.mxu0
    %527 = vdwg.mxu0
    %528 = vmatprep.subr.bf16.mxu0 %v390
    %529 = vmatpush1.bf16.msra.mxu0 %v389
    %530 = vmatprep.subr.bf16.mxu0 %v386
    %531 = vmatpush1.bf16.msra.mxu0 %v385
    %532 = vmatprep.subr.bf16.mxu0 %v382
    %533 = vmatpush1.bf16.msra.mxu0 %v381
    %534 = vmatprep.subr.bf16.mxu0 %v378
    %535 = vmatpush1.bf16.msra.mxu0 %v377
    %536 = vmatprep.subr.bf16.mxu0 %v374
    %537 = vmatpush1.bf16.msra.mxu0 %v373
    %538 = vmatprep.subr.bf16.mxu0 %v370
    %539 = vmatpush1.bf16.msra.mxu0 %v369
    %540 = vmatprep.subr.bf16.mxu0 %v366
    %541 = vmatpush1.bf16.msra.mxu0 %v365
    %542 = vmatprep.subr.bf16.mxu0 %v362
    %543 = vmatpush1.bf16.msra.mxu0 %v361
    %544 = vmatprep.subr.bf16.mxu0 %v422
    %545 = vmatpush2.bf16.msra.mxu0 %v421
    %546 = vmatprep.subr.bf16.mxu0 %v418
    %547 = vmatpush2.bf16.msra.mxu0 %v417
    %548 = vmatprep.subr.bf16.mxu0 %v414
    %549 = vmatpush2.bf16.msra.mxu0 %v413
    %550 = vmatprep.subr.bf16.mxu0 %v410
    %551 = vmatpush2.bf16.msra.mxu0 %v409
    %552 = vmatprep.subr.bf16.mxu0 %v406
    %553 = vmatpush2.bf16.msra.mxu0 %v405
    %554 = vmatprep.subr.bf16.mxu0 %v402
    %555 = vmatpush2.bf16.msra.mxu0 %v401
    %556 = vmatprep.subr.bf16.mxu0 %v398
    %557 = vmatpush2.bf16.msra.mxu0 %v397
    %558 = vmatprep.subr.bf16.mxu0 %v394
    %559 = vmatpush2.bf16.msra.mxu0 %v393
    %560 = vmatprep.mubr.bf16.mxu0 %v164
    %561 = vmatmul.mubr.bf16.gmra.mxu0 %v163
    %v562 = vpop.f32.mrf.mxu0
    %v563 = vadd.f32 %v151, %v562
    %v564 = vpop.f32.mrf.mxu0
    %v565 = vadd.f32 %v155, %v564
    %v566 = vpop.f32.mrf.mxu0
    %v567 = vpop.f32.mrf.mxu0
    %568 = vdwg.mxu0
    %v569 = vmax.f32 %v522, 0.0
    %v570 = vmax.f32 %v524, 0.0
    %v571 = vmax.f32 %v563, 0.0
    %v572 = vmax.f32 %v565, 0.0
    %v573 = vpack.c.bf16 %v569, %v569
    %v574 = vpack.c.bf16 %v570, %v570
    %v575 = vpack.c.bf16 %v571, %v571
    %v576 = vpack.c.bf16 %v572, %v572
    %v577 = vld [vmem:[#allocation8] sm:$0xf]
    %v578 = vld [vmem:[#allocation8 + $0x4] sm:$0xf]
    %v579 = vld [vmem:[#allocation8 + $0x8] sm:$0xf]
    %v580 = vld [vmem:[#allocation8 + $0xc] sm:$0xf]
    %v581 = vld [vmem:[#allocation8 + $0x10] sm:$0xf]
    %v582 = vld [vmem:[#allocation8 + $0x14] sm:$0xf]
    %v583 = vld [vmem:[#allocation8 + $0x18] sm:$0xf]
    %v584 = vld [vmem:[#allocation8 + $0x1c] sm:$0xf]
    %v585 = vld [vmem:[#allocation8 + $0x20] sm:$0xf]
    %v586 = vld [vmem:[#allocation8 + $0x24] sm:$0xf]
    %v587 = vld [vmem:[#allocation8 + $0x28] sm:$0xf]
    %v588 = vld [vmem:[#allocation8 + $0x2c] sm:$0xf]
    %v589 = vld [vmem:[#allocation8 + $0x30] sm:$0xf]
    %v590 = vld [vmem:[#allocation8 + $0x34] sm:$0xf]
    %v591 = vld [vmem:[#allocation8 + $0x38] sm:$0xf]
    %v592 = vld [vmem:[#allocation8 + $0x3c] sm:$0xf]
    %v593 = vld [vmem:[#allocation8 + $0x40] sm:$0xf]
    %v594 = vld [vmem:[#allocation8 + $0x44] sm:$0xf]
    %v595 = vld [vmem:[#allocation8 + $0x48] sm:$0xf]
    %v596 = vld [vmem:[#allocation8 + $0x4c] sm:$0xf]
    %v597 = vld [vmem:[#allocation8 + $0x50] sm:$0xf]
    %v598 = vld [vmem:[#allocation8 + $0x54] sm:$0xf]
    %v599 = vld [vmem:[#allocation8 + $0x58] sm:$0xf]
    %v600 = vld [vmem:[#allocation8 + $0x5c] sm:$0xf]
    %v601 = vld [vmem:[#allocation8 + $0x60] sm:$0xf]
    %v602 = vld [vmem:[#allocation8 + $0x64] sm:$0xf]
    %v603 = vld [vmem:[#allocation8 + $0x68] sm:$0xf]
    %v604 = vld [vmem:[#allocation8 + $0x6c] sm:$0xf]
    %v605 = vld [vmem:[#allocation8 + $0x70] sm:$0xf]
    %v606 = vld [vmem:[#allocation8 + $0x74] sm:$0xf]
    %v607 = vld [vmem:[#allocation8 + $0x78] sm:$0xf]
    %v608 = vld [vmem:[#allocation8 + $0x7c] sm:$0xf]
    %v609 = vld [vmem:[#allocation8 + $0x80] sm:$0xf]
    %v610 = vld [vmem:[#allocation8 + $0x84] sm:$0xf]
    %v611 = vld [vmem:[#allocation8 + $0x88] sm:$0xf]
    %v612 = vld [vmem:[#allocation8 + $0x8c] sm:$0xf]
    %v613 = vld [vmem:[#allocation8 + $0x90] sm:$0xf]
    %v614 = vld [vmem:[#allocation8 + $0x94] sm:$0xf]
    %v615 = vld [vmem:[#allocation8 + $0x98] sm:$0xf]
    %v616 = vld [vmem:[#allocation8 + $0x9c] sm:$0xf]
    %v617 = vld [vmem:[#allocation8 + $0xa0] sm:$0xf]
    %v618 = vld [vmem:[#allocation8 + $0xa4] sm:$0xf]
    %v619 = vld [vmem:[#allocation8 + $0xa8] sm:$0xf]
    %v620 = vld [vmem:[#allocation8 + $0xac] sm:$0xf]
    %v621 = vld [vmem:[#allocation8 + $0xb0] sm:$0xf]
    %v622 = vld [vmem:[#allocation8 + $0xb4] sm:$0xf]
    %v623 = vld [vmem:[#allocation8 + $0xb8] sm:$0xf]
    %v624 = vld [vmem:[#allocation8 + $0xbc] sm:$0xf]
    %v625 = vld [vmem:[#allocation8 + $0xc0] sm:$0xf]
    %v626 = vld [vmem:[#allocation8 + $0xc4] sm:$0xf]
    %v627 = vld [vmem:[#allocation8 + $0xc8] sm:$0xf]
    %v628 = vld [vmem:[#allocation8 + $0xcc] sm:$0xf]
    %v629 = vld [vmem:[#allocation8 + $0xd0] sm:$0xf]
    %v630 = vld [vmem:[#allocation8 + $0xd4] sm:$0xf]
    %v631 = vld [vmem:[#allocation8 + $0xd8] sm:$0xf]
    %v632 = vld [vmem:[#allocation8 + $0xdc] sm:$0xf]
    %v633 = vld [vmem:[#allocation8 + $0xe0] sm:$0xf]
    %v634 = vld [vmem:[#allocation8 + $0xe4] sm:$0xf]
    %v635 = vld [vmem:[#allocation8 + $0xe8] sm:$0xf]
    %v636 = vld [vmem:[#allocation8 + $0xec] sm:$0xf]
    %v637 = vld [vmem:[#allocation8 + $0xf0] sm:$0xf]
    %v638 = vld [vmem:[#allocation8 + $0xf4] sm:$0xf]
    %v639 = vld [vmem:[#allocation8 + $0xf8] sm:$0xf]
    %v640 = vld [vmem:[#allocation8 + $0xfc] sm:$0xf]
    %v641 = vld [vmem:[%s4] sm:$0x1]
    %v643 = vlaneseq
    %v644 = vshrl.u32 %v643, 7
    %v645 = vsub.s32 0, %v644
    %v646 = vrot.slane %v641, %v645
    %v712 = vunpack.c.l.b16 %v577
    %v713 = vunpack.c.l.b16 %v578
    %v714 = vunpack.c.l.b16 %v579
    %v715 = vunpack.c.l.b16 %v580
    %v716 = vunpack.c.l.b16 %v581
    %v717 = vunpack.c.l.b16 %v582
    %v718 = vunpack.c.l.b16 %v583
    %v719 = vunpack.c.l.b16 %v584
    %v720 = vunpack.c.l.b16 %v585
    %v721 = vunpack.c.l.b16 %v586
    %v722 = vunpack.c.l.b16 %v587
    %v723 = vunpack.c.l.b16 %v588
    %v724 = vunpack.c.l.b16 %v589
    %v725 = vunpack.c.l.b16 %v590
    %v726 = vunpack.c.l.b16 %v591
    %v727 = vunpack.c.l.b16 %v592
    %v728 = vunpack.c.l.b16 %v593
    %v729 = vunpack.c.l.b16 %v594
    %v730 = vunpack.c.l.b16 %v595
    %v731 = vunpack.c.l.b16 %v596
    %v732 = vunpack.c.l.b16 %v597
    %v733 = vunpack.c.l.b16 %v598
    %v734 = vunpack.c.l.b16 %v599
    %v735 = vunpack.c.l.b16 %v600
    %v736 = vunpack.c.l.b16 %v601
    %v737 = vunpack.c.l.b16 %v602
    %v738 = vunpack.c.l.b16 %v603
    %v739 = vunpack.c.l.b16 %v604
    %v740 = vunpack.c.l.b16 %v605
    %v741 = vunpack.c.l.b16 %v606
    %v742 = vunpack.c.l.b16 %v607
    %v743 = vunpack.c.l.b16 %v608
    %v744 = vunpack.c.l.b16 %v609
    %v745 = vunpack.c.l.b16 %v610
    %v746 = vunpack.c.l.b16 %v611
    %v747 = vunpack.c.l.b16 %v612
    %v748 = vunpack.c.l.b16 %v613
    %v749 = vunpack.c.l.b16 %v614
    %v750 = vunpack.c.l.b16 %v615
    %v751 = vunpack.c.l.b16 %v616
    %v752 = vunpack.c.l.b16 %v617
    %v753 = vunpack.c.l.b16 %v618
    %v754 = vunpack.c.l.b16 %v619
    %v755 = vunpack.c.l.b16 %v620
    %v756 = vunpack.c.l.b16 %v621
    %v757 = vunpack.c.l.b16 %v622
    %v758 = vunpack.c.l.b16 %v623
    %v759 = vunpack.c.l.b16 %v624
    %v760 = vunpack.c.l.b16 %v625
    %v761 = vunpack.c.l.b16 %v626
    %v762 = vunpack.c.l.b16 %v627
    %v763 = vunpack.c.l.b16 %v628
    %v764 = vunpack.c.l.b16 %v629
    %v765 = vunpack.c.l.b16 %v630
    %v766 = vunpack.c.l.b16 %v631
    %v767 = vunpack.c.l.b16 %v632
    %v768 = vunpack.c.l.b16 %v633
    %v769 = vunpack.c.l.b16 %v634
    %v770 = vunpack.c.l.b16 %v635
    %v771 = vunpack.c.l.b16 %v636
    %v772 = vunpack.c.l.b16 %v637
    %v773 = vunpack.c.l.b16 %v638
    %v774 = vunpack.c.l.b16 %v639
    %v775 = vunpack.c.l.b16 %v640
    %v776 = vpack.c.b16 %v713, %v712
    %v777 = vpack.c.b16 %v715, %v714
    %v778 = vpack.c.b16 %v717, %v716
    %v779 = vpack.c.b16 %v719, %v718
    %v780 = vpack.c.b16 %v721, %v720
    %v781 = vpack.c.b16 %v723, %v722
    %v782 = vpack.c.b16 %v725, %v724
    %v783 = vpack.c.b16 %v727, %v726
    %v784 = vpack.c.b16 %v729, %v728
    %v785 = vpack.c.b16 %v731, %v730
    %v786 = vpack.c.b16 %v733, %v732
    %v787 = vpack.c.b16 %v735, %v734
    %v788 = vpack.c.b16 %v737, %v736
    %v789 = vpack.c.b16 %v739, %v738
    %v790 = vpack.c.b16 %v741, %v740
    %v791 = vpack.c.b16 %v743, %v742
    %v792 = vpack.c.b16 %v745, %v744
    %v793 = vpack.c.b16 %v747, %v746
    %v794 = vpack.c.b16 %v749, %v748
    %v795 = vpack.c.b16 %v751, %v750
    %v796 = vpack.c.b16 %v753, %v752
    %v797 = vpack.c.b16 %v755, %v754
    %v798 = vpack.c.b16 %v757, %v756
    %v799 = vpack.c.b16 %v759, %v758
    %v800 = vpack.c.b16 %v761, %v760
    %v801 = vpack.c.b16 %v763, %v762
    %v802 = vpack.c.b16 %v765, %v764
    %v803 = vpack.c.b16 %v767, %v766
    %v804 = vpack.c.b16 %v769, %v768
    %v805 = vpack.c.b16 %v771, %v770
    %v806 = vpack.c.b16 %v773, %v772
    %v807 = vpack.c.b16 %v775, %v774
    %840 = vmatprep.subr.bf16.mxu0 0
    %841 = vmatpush1.bf16.msra.mxu0 %v783
    %842 = vmatprep.subr.bf16.mxu0 0
    %843 = vmatpush1.bf16.msra.mxu0 %v782
    %844 = vmatprep.subr.bf16.mxu0 0
    %845 = vmatpush1.bf16.msra.mxu0 %v781
    %846 = vmatprep.subr.bf16.mxu0 0
    %847 = vmatpush1.bf16.msra.mxu0 %v780
    %848 = vmatprep.subr.bf16.mxu0 0
    %849 = vmatpush1.bf16.msra.mxu0 %v779
    %850 = vmatprep.subr.bf16.mxu0 0
    %851 = vmatpush1.bf16.msra.mxu0 %v778
    %852 = vmatprep.subr.bf16.mxu0 0
    %853 = vmatpush1.bf16.msra.mxu0 %v777
    %854 = vmatprep.subr.bf16.mxu0 0
    %855 = vmatpush1.bf16.msra.mxu0 %v776
    %856 = vmatprep.subr.bf16.mxu0 0
    %857 = vmatpush2.bf16.msra.mxu0 %v791
    %858 = vmatprep.subr.bf16.mxu0 0
    %859 = vmatpush2.bf16.msra.mxu0 %v790
    %860 = vmatprep.subr.bf16.mxu0 0
    %861 = vmatpush2.bf16.msra.mxu0 %v789
    %862 = vmatprep.subr.bf16.mxu0 0
    %863 = vmatpush2.bf16.msra.mxu0 %v788
    %864 = vmatprep.subr.bf16.mxu0 0
    %865 = vmatpush2.bf16.msra.mxu0 %v787
    %866 = vmatprep.subr.bf16.mxu0 0
    %867 = vmatpush2.bf16.msra.mxu0 %v786
    %868 = vmatprep.subr.bf16.mxu0 0
    %869 = vmatpush2.bf16.msra.mxu0 %v785
    %870 = vmatprep.subr.bf16.mxu0 0
    %871 = vmatpush2.bf16.msra.mxu0 %v784
    %872 = vmatprep.mubr.bf16.mxu0 %v574
    %873 = vmatmul.mubr.bf16.gmra.mxu0 %v573
    %v874 = vpop.f32.mrf.mxu0
    %v875 = vadd.f32 %v646, %v874
    %v876 = vpop.f32.mrf.mxu0
    %v877 = vpop.f32.mrf.mxu0
    %v878 = vpop.f32.mrf.mxu0
    %879 = vdwg.mxu0
    %880 = vmatprep.subr.bf16.mxu0 0
    %881 = vmatpush1.bf16.msra.mxu0 %v799
    %882 = vmatprep.subr.bf16.mxu0 0
    %883 = vmatpush1.bf16.msra.mxu0 %v798
    %884 = vmatprep.subr.bf16.mxu0 0
    %885 = vmatpush1.bf16.msra.mxu0 %v797
    %886 = vmatprep.subr.bf16.mxu0 0
    %887 = vmatpush1.bf16.msra.mxu0 %v796
    %888 = vmatprep.subr.bf16.mxu0 0
    %889 = vmatpush1.bf16.msra.mxu0 %v795
    %890 = vmatprep.subr.bf16.mxu0 0
    %891 = vmatpush1.bf16.msra.mxu0 %v794
    %892 = vmatprep.subr.bf16.mxu0 0
    %893 = vmatpush1.bf16.msra.mxu0 %v793
    %894 = vmatprep.subr.bf16.mxu0 0
    %895 = vmatpush1.bf16.msra.mxu0 %v792
    %896 = vmatprep.subr.bf16.mxu0 0
    %897 = vmatpush2.bf16.msra.mxu0 %v807
    %898 = vmatprep.subr.bf16.mxu0 0
    %899 = vmatpush2.bf16.msra.mxu0 %v806
    %900 = vmatprep.subr.bf16.mxu0 0
    %901 = vmatpush2.bf16.msra.mxu0 %v805
    %902 = vmatprep.subr.bf16.mxu0 0
    %903 = vmatpush2.bf16.msra.mxu0 %v804
    %904 = vmatprep.subr.bf16.mxu0 0
    %905 = vmatpush2.bf16.msra.mxu0 %v803
    %906 = vmatprep.subr.bf16.mxu0 0
    %907 = vmatpush2.bf16.msra.mxu0 %v802
    %908 = vmatprep.subr.bf16.mxu0 0
    %909 = vmatpush2.bf16.msra.mxu0 %v801
    %910 = vmatprep.subr.bf16.mxu0 0
    %911 = vmatpush2.bf16.msra.mxu0 %v800
    %912 = vmatprep.mubr.bf16.mxu0 %v576
    %913 = vmatmul.mubr.bf16.gmra.mxu0 %v575
    %v914 = vpop.f32.mrf.mxu0
    %v915 = vadd.f32 %v875, %v914
    %v916 = vpop.f32.mrf.mxu0
    %v917 = vpop.f32.mrf.mxu0
    %v918 = vpop.f32.mrf.mxu0
    %919 = vdwg.mxu0
    %920 = vst [vmem:[#allocation10] sm:$0xff] %v915
    // Predicated region
    $region38: #{tpu_custom_call.1} parent=1 // pred_check
      _
    $region39: #{tpu_custom_call.1} parent=1 // pred_check_branch
      %922 = sbr.rel (0) target = $region41
    $region40: #{tpu_custom_call.1} parent=1 // pred_region
      %s924 = ssub.s32 128, 128
      %925 = vsyncadd [#allocation4], %s924
      %s927 = sshll.u32 [#allocation10], 4
      %s928 = int_to_ptr.vmem [resolvable:$true] %s927
      %930 = dma.vmem_to_hbm [thread:$0]  %s928, 128, %s5, [#allocation4]
    $region41: #{tpu_custom_call.1} parent=1 // pred_fallthru
      _
    // Predicated region
    $region42: #{tpu_custom_call.1} parent=1 // pred_check
      _
    $region43: #{tpu_custom_call.1} parent=1 // pred_check_branch
      %932 = sbr.rel (0) target = $region45
    $region44: #{tpu_custom_call.1} parent=1 // pred_region
      %933 = dma.done [#allocation4], 128
    $region45: #{tpu_custom_call.1} parent=1 // pred_fallthru
      _
    %934 = vsyncpa [#allocation3], 1
    %935 = vsyncpa [#allocation6], 1
    %936 = vsyncpa [#allocation9], 1
    %937 = vsyncpa [#allocation4], 1

</llo_original>
